<compile_context>
chip_gen: v5e
topology: v5e:2x2
jax: 0.10.0
libtpu: 0.0.40
codegen_flags: <defaults>
</compile_context>

<pallas_src>
import functools
from typing import NamedTuple

import jax
import jax.numpy as jnp
from jax.experimental import pallas as pl
from jax.experimental.pallas import tpu as pltpu

_LANE = 128
_MIB = 1024 * 1024


def _round_up(x, m):
    return (x + m - 1) // m * m


def _sublane(dtype):
    """Packed sublane granularity: 8 for 4-byte, 16 for 2-byte, 32 for 1-byte."""
    return max(8, 32 // jnp.dtype(dtype).itemsize)


def _vmem_capacity_bytes():
    """Per-core VMEM capacity, generation-aware, with conservative fallbacks."""
    try:
        return int(pltpu.get_tpu_info().vmem_capacity_bytes)
    except Exception:
        pass
    try:
        kind = jax.devices()[0].device_kind.lower()
    except Exception:
        kind = ""
    if "v7" in kind:
        return 64 * _MIB
    if "v5" in kind or "v6" in kind:
        return 128 * _MIB
    return 64 * _MIB  # unknown chip: be conservative


class PreparedMLP(NamedTuple):
    weights_p: tuple   # padded (in_p, out_p) weights
    biases_p: tuple    # padded (1, out_p) biases
    dims: tuple        # original feature dims [in, h1, ..., out]
    dims_p: tuple      # lane-padded feature dims


def prepare_mlp_params(weights, biases):
    """Zero-pad feature dims to the 128-lane width once (call-invariant).

    Zero padding is exact: padded input columns, weight rows/cols and bias
    entries are all zero, so pad lanes carry zeros through every layer.
    """
    dims = tuple([weights[0].shape[0]] + [w.shape[1] for w in weights])
    dims_p = tuple(_round_up(d, _LANE) for d in dims)
    weights_p, biases_p = [], []
    for i, (w, b) in enumerate(zip(weights, biases)):
        if w.shape == (dims_p[i], dims_p[i + 1]):
            wp = w
        else:
            wp = jnp.zeros((dims_p[i], dims_p[i + 1]), w.dtype)
            wp = wp.at[:w.shape[0], :w.shape[1]].set(w)
        bp = jnp.zeros((1, dims_p[i + 1]), b.dtype).at[0, :b.shape[0]].set(b)
        weights_p.append(wp)
        biases_p.append(bp)
    return PreparedMLP(tuple(weights_p), tuple(biases_p), dims, dims_p)


# --------------------------- fused (resident) kernel ---------------------------

def _mlp_kernel(n_layers, *refs):
    """Fused MLP forward over one batch tile.

    refs = (x_ref, w_0..w_{L-1}, b_0..b_{L-1}, o_ref)
    Layer i: h = h @ W_i + b_i ; ReLU on all but the last layer.
    MXU operands stay in storage dtype; accumulation is f32; ReLU is fused
    with a single downcast to the next layer's weight dtype.
    """
    x_ref = refs[0]
    w_refs = refs[1:1 + n_layers]
    b_refs = refs[1 + n_layers:1 + 2 * n_layers]
    o_ref = refs[1 + 2 * n_layers]

    h = x_ref[...]
    for i in range(n_layers):
        w = w_refs[i][...]
        acc = jnp.dot(h.astype(w.dtype), w, preferred_element_type=jnp.float32)
        acc = acc + b_refs[i][...].astype(jnp.float32)     # (1, out) broadcast
        if i < n_layers - 1:
            # fused ReLU + single downcast to the next layer's operand dtype
            h = jnp.maximum(acc, 0.0).astype(w_refs[i + 1].dtype)
        else:
            o_ref[...] = acc.astype(o_ref.dtype)


# ------------------- streaming fallback (weights from HBM) --------------------

def _linear_kernel(apply_relu, x_ref, w_ref, b_ref, o_ref, acc_ref):
    @pl.when(pl.program_id(2) == 0)
    def _():
        acc_ref[...] = jnp.zeros_like(acc_ref)

    acc_ref[...] += jnp.dot(x_ref[...].astype(w_ref.dtype), w_ref[...],
                            preferred_element_type=jnp.float32)

    @pl.when(pl.program_id(2) == pl.num_programs(2) - 1)
    def _():
        acc = acc_ref[...] + b_ref[...].astype(jnp.float32)
        if apply_relu:
            acc = jnp.maximum(acc, 0.0)
        o_ref[...] = acc.astype(o_ref.dtype)


def _pick_div(total, candidates):
    for c in candidates:
        if total % c == 0:
            return c
    return total


def _linear_streaming(x_p, w_p, b_p, *, apply_relu, out_dtype, tm, vmem_limit):
    """One Linear(+ReLU) layer with weight slabs pipelined from HBM."""
    M, K = x_p.shape
    N = w_p.shape[1]
    tk = _pick_div(K, (512, 256, 128))
    tn = _pick_div(N, (256, 128))
    grid = (M // tm, N // tn, K // tk)
    return pl.pallas_call(
        functools.partial(_linear_kernel, apply_relu),
        out_shape=jax.ShapeDtypeStruct((M, N), out_dtype),
        grid=grid,
        in_specs=[pl.BlockSpec((tm, tk), lambda i, j, k: (i, k)),
                  pl.BlockSpec((tk, tn), lambda i, j, k: (k, j)),
                  pl.BlockSpec((1, tn), lambda i, j, k: (0, j))],
        out_specs=pl.BlockSpec((tm, tn), lambda i, j, k: (i, j)),
        scratch_shapes=[pltpu.VMEM((tm, tn), jnp.float32)],
        compiler_params=pltpu.CompilerParams(
            dimension_semantics=("parallel", "parallel", "arbitrary"),
            vmem_limit_bytes=vmem_limit),
    )(x_p, w_p, b_p)


# ------------------------------- forward wrapper -------------------------------

def mlp_forward(x, weights=None, biases=None, *, prepared=None,
                max_batch_tile=512, vmem_budget_bytes=None,
                force_streaming=False):
    """x: (B, input_dim); weights[i]: (in_i, out_i); biases[i]: (out_i,)."""
    if prepared is None:
        prepared = prepare_mlp_params(weights, biases)
    weights_p, biases_p, dims, dims_p = prepared
    n_layers = len(weights_p)
    B, in_dim = x.shape
    assert in_dim == dims[0], "input feature dim mismatch"
    out_dim = dims[-1]
    dtype = x.dtype
    x_item = jnp.dtype(dtype).itemsize
    d0p, dLp = dims_p[0], dims_p[-1]

    # ---- generation-aware VMEM budget / limit --------------------------------
    vmem_cap = _vmem_capacity_bytes()
    if vmem_budget_bytes is None:
        vmem_budget_bytes = vmem_cap - 16 * _MIB     # headroom for Mosaic scratch
    budget = max(int(vmem_budget_bytes), 4 * _MIB)

    w_bytes = sum(int(w.size) * w.dtype.itemsize for w in weights_p)
    b_bytes = sum(int(b.size) * b.dtype.itemsize for b in biases_p)
    max_width = max(dims_p)
    act_item = max([x_item] + [w.dtype.itemsize for w in weights_p])

    # Single-buffer resident weights/biases when this JAX supports pipeline_mode
    # (their index_map is constant, so there is nothing to prefetch).
    try:
        pl.BlockSpec(weights_p[0].shape, lambda i: (0, 0),
                     pipeline_mode=pl.Buffered(1))
        single_buffer, resident_factor = True, 1
    except (AttributeError, TypeError, ValueError):
        single_buffer, resident_factor = False, 2

    def _resident_specs(shapes, single):
        if single:
            return [pl.BlockSpec(s, lambda i: (0, 0),
                                 pipeline_mode=pl.Buffered(1)) for s in shapes]
        return [pl.BlockSpec(s, lambda i: (0, 0)) for s in shapes]

    def _vmem_estimate(tb_):
        # double-buffered x/out tiles + both live dot operands (storage-dtype
        # input and f32 accumulator) + resident weights/biases (x buffer count).
        tiles = 2 * tb_ * d0p * x_item + 2 * tb_ * dLp * x_item
        live = tb_ * max_width * (act_item + 4)
        return tiles + live + resident_factor * (w_bytes + b_bytes)

    # ---- batch tile: MXU-sized, dtype-aware sublane, >= 2 grid steps ----------
    sub = _sublane(dtype)
    if B >= 512:
        gran = 256
    elif B >= 128:
        gran = 128
    else:
        gran = sub
    tb = min(max_batch_tile, _round_up(B, gran))
    tb = max(gran, (tb // gran) * gran)
    if B > gran:                  # non-trivial batch -> at least 2 grid steps
        tb = min(tb, _round_up(B, 2 * gran) // 2)
    while tb > gran and _vmem_estimate(tb) > budget:
        tb -= gran
    while tb > sub and _vmem_estimate(tb) > budget:
        tb -= sub                 # last resort: shrink below the MXU tile

    use_streaming = (force_streaming
                     or _vmem_estimate(tb) > budget
                     or resident_factor * (w_bytes + b_bytes) > 0.8 * budget)

    if use_streaming:
        # Weights do not fit VMEM-resident (easy on v7x's 64 MiB): stream weight
        # slabs from HBM with one pipelined (M, N, K)-tiled pallas_call per layer.
        # TODO(synk): fuse consecutive layers with pltpu.emit_pipeline so
        # intermediate activations stay in VMEM instead of round-tripping HBM.
        stream_limit = int(min(vmem_cap - 8 * _MIB, 64 * _MIB))
        tm = min(256, _round_up(B, sub))
        m_pad = _round_up(B, tm)
        if m_pad != B or in_dim != d0p:
            h = jnp.zeros((m_pad, d0p), dtype).at[:B, :in_dim].set(x)
        else:
            h = x
        for i in range(n_layers):
            h = _linear_streaming(h, weights_p[i], biases_p[i],
                                  apply_relu=(i < n_layers - 1),
                                  out_dtype=dtype, tm=tm,
                                  vmem_limit=stream_limit)
        if m_pad != B or out_dim != dLp:
            return h[:B, :out_dim]
        return h

    # ---- fused path: all weights VMEM-resident, batch-tiled grid --------------
    B_pad = _round_up(B, tb)
    if B_pad != B or in_dim != d0p:
        x_p = jnp.zeros((B_pad, d0p), dtype).at[:B, :in_dim].set(x)
    else:
        x_p = x

    grid = (B_pad // tb,)
    x_spec = pl.BlockSpec((tb, d0p), lambda i: (i, 0))
    o_spec = pl.BlockSpec((tb, dLp), lambda i: (i, 0))

    flops = 2 * B_pad * sum(dims_p[i] * dims_p[i + 1] for i in range(n_layers))
    bytes_accessed = (int(x_p.size) * x_item + w_bytes + b_bytes
                      + B_pad * dLp * x_item)
    cost = pl.CostEstimate(flops=flops, transcendentals=0,
                           bytes_accessed=bytes_accessed)
    vmem_limit = int(min(vmem_cap - 8 * _MIB,
                         max(2 * _vmem_estimate(tb), 48 * _MIB)))
    kernel = functools.partial(_mlp_kernel, n_layers)

    def _call(single):
        w_specs = _resident_specs([w.shape for w in weights_p], single)
        b_specs = _resident_specs([b.shape for b in biases_p], single)
        return pl.pallas_call(
            kernel,
            out_shape=jax.ShapeDtypeStruct((B_pad, dLp), dtype),
            grid=grid,
            in_specs=[x_spec] + w_specs + b_specs,
            out_specs=o_spec,
            compiler_params=pltpu.CompilerParams(
                dimension_semantics=("parallel",),   # megacore / 2-TC split
                vmem_limit_bytes=vmem_limit),
            cost_estimate=cost,
        )(x_p, *weights_p, *biases_p)

    if single_buffer:
        try:
            out_p = _call(True)
        except Exception:
            # Older Mosaic without single-buffer pipeline support: retry default.
            out_p = _call(False)
    else:
        out_p = _call(False)

    if B_pad != B or out_dim != dLp:
        return out_p[:B, :out_dim]
    return out_p


# ---------------------------------- helpers -----------------------------------

def init_mlp_params(key, input_dim, width, depth, output_dim):
    """Init mirroring the PyTorch MLP layer shapes; weights returned as (in, out)."""
    if depth == 0:
        dims = [(input_dim, output_dim)]
    else:
        dims = [(input_dim, width)]
        dims += [(width, width)] * (depth - 1)
        dims += [(width, output_dim)]

    weights, biases = [], []
    for (fan_in, fan_out) in dims:
        key, kw, kb = jax.random.split(key, 3)
        bound = 1.0 / (fan_in ** 0.5)  # PyTorch nn.Linear default uniform bound
        weights.append(jax.random.uniform(kw, (fan_in, fan_out), jnp.float32,
                                          -bound, bound))
        biases.append(jax.random.uniform(kb, (fan_out,), jnp.float32,
                                         -bound, bound))
    return weights, biases


def mlp_reference(x, weights, biases):
    h = x
    for i, (w, b) in enumerate(zip(weights, biases)):
        h = h @ w + b
        if i < len(weights) - 1:
            h = jnp.maximum(h, 0.0)
    return h


if __name__ == "__main__":
    key = jax.random.PRNGKey(0)

    # depth > 0 path: Linear -> ReLU -> Linear -> ReLU -> Linear
    B, input_dim, width, depth, output_dim = 8, 16, 32, 2, 8
    key, kx = jax.random.split(key)
    x = jax.random.normal(kx, (B, input_dim), jnp.float32)
    weights, biases = init_mlp_params(key, input_dim, width, depth, output_dim)
    ref = mlp_reference(x, weights, biases)

    out = jax.block_until_ready(mlp_forward(x, weights, biases))
    assert out.shape == (B, output_dim)
    assert jnp.allclose(out, ref, atol=1e-5, rtol=1e-5)

    # prepared (cached padded params) path reuses the same kernel
    prep = prepare_mlp_params(weights, biases)
    out_prep = jax.block_until_ready(mlp_forward(x, prepared=prep))
    assert jnp.allclose(out_prep, ref, atol=1e-5, rtol=1e-5)

    # depth == 0 path: single Linear
    key, k0 = jax.random.split(key)
    w0, b0 = init_mlp_params(k0, input_dim, width, 0, output_dim)
    out0 = jax.block_until_ready(mlp_forward(x, w0, b0))
    assert out0.shape == (B, output_dim)
    assert jnp.allclose(out0, mlp_reference(x, w0, b0), atol=1e-5, rtol=1e-5)

    # bf16 weights/activations (f32 accumulation inside the kernel)
    xb = x.astype(jnp.bfloat16)
    wb = [w.astype(jnp.bfloat16) for w in weights]
    bb = [b.astype(jnp.bfloat16) for b in biases]
    outb = jax.block_until_ready(mlp_forward(xb, wb, bb))
    assert outb.shape == (B, output_dim) and outb.dtype == jnp.bfloat16
    assert jnp.allclose(outb.astype(jnp.float32), ref, atol=1e-1, rtol=1e-1)

    # streaming fallback path (weights pipelined from HBM)
    outs = jax.block_until_ready(mlp_forward(x, weights, biases,
                                             force_streaming=True))
    assert outs.shape == (B, output_dim)
    assert jnp.allclose(outs, ref, atol=1e-5, rtol=1e-5)

    print("KERNEL_OK")
</pallas_src>

<mosaic_0001>
module attributes {stable_mosaic.version = 11 : i64} {
  func.func @_mlp_kernel(%arg0: i32, %arg1: memref<8x128xf32, #tpu.memory_space<vmem>>, %arg2: memref<128x128xf32, #tpu.memory_space<vmem>>, %arg3: memref<128x128xf32, #tpu.memory_space<vmem>>, %arg4: memref<128x128xf32, #tpu.memory_space<vmem>>, %arg5: memref<1x128xf32, #tpu.memory_space<vmem>>, %arg6: memref<1x128xf32, #tpu.memory_space<vmem>>, %arg7: memref<1x128xf32, #tpu.memory_space<vmem>>, %arg8: memref<8x128xf32, #tpu.memory_space<vmem>>) attributes {dimension_semantics = [#tpu.dimension_semantics<parallel>], iteration_bounds = array<i64: 1>, scalar_prefetch = 0 : i64, scratch_operands = 0 : i64, tpu.core_type = #tpu.core_type<tc>, window_params = [{transform_indices = @transform_0, window_bounds = array<i64: 8, 128>}, {pipeline_mode = #tpu.pipeline_mode<synchronous>, transform_indices = @transform_1, window_bounds = array<i64: 128, 128>}, {pipeline_mode = #tpu.pipeline_mode<synchronous>, transform_indices = @transform_2, window_bounds = array<i64: 128, 128>}, {pipeline_mode = #tpu.pipeline_mode<synchronous>, transform_indices = @transform_3, window_bounds = array<i64: 128, 128>}, {pipeline_mode = #tpu.pipeline_mode<synchronous>, transform_indices = @transform_4, window_bounds = array<i64: 1, 128>}, {pipeline_mode = #tpu.pipeline_mode<synchronous>, transform_indices = @transform_5, window_bounds = array<i64: 1, 128>}, {pipeline_mode = #tpu.pipeline_mode<synchronous>, transform_indices = @transform_6, window_bounds = array<i64: 1, 128>}, {transform_indices = @transform_7, window_bounds = array<i64: 8, 128>}]} {
    %c0 = arith.constant 0 : index
    %c0_0 = arith.constant 0 : index
    %0 = vector.load %arg1[%c0, %c0_0] : memref<8x128xf32, #tpu.memory_space<vmem>>, vector<8x128xf32>
    %c0_1 = arith.constant 0 : index
    %c0_2 = arith.constant 0 : index
    %1 = vector.load %arg2[%c0_1, %c0_2] : memref<128x128xf32, #tpu.memory_space<vmem>>, vector<128x128xf32>
    %cst = arith.constant dense<0.000000e+00> : vector<8x128xf32>
    %2 = tpu.matmul %0, %1, %cst {dimension_numbers = #tpu.dot_dimension_numbers<[1], [0], [0], [1], [0, 0, 1, 1], [], []>} : vector<8x128xf32>, vector<128x128xf32>, vector<8x128xf32> -> vector<8x128xf32>
    %c0_3 = arith.constant 0 : index
    %c0_4 = arith.constant 0 : index
    %3 = vector.load %arg5[%c0_3, %c0_4] : memref<1x128xf32, #tpu.memory_space<vmem>>, vector<1x128xf32>
    %4 = vector.broadcast %3 : vector<1x128xf32> to vector<8x128xf32>
    %5 = arith.addf %2, %4 : vector<8x128xf32>
    %cst_5 = arith.constant 0.000000e+00 : f32
    %6 = vector.broadcast %cst_5 : f32 to vector<8x128xf32>
    %7 = arith.maximumf %5, %6 : vector<8x128xf32>
    %c0_6 = arith.constant 0 : index
    %c0_7 = arith.constant 0 : index
    %8 = vector.load %arg3[%c0_6, %c0_7] : memref<128x128xf32, #tpu.memory_space<vmem>>, vector<128x128xf32>
    %cst_8 = arith.constant dense<0.000000e+00> : vector<8x128xf32>
    %9 = tpu.matmul %7, %8, %cst_8 {dimension_numbers = #tpu.dot_dimension_numbers<[1], [0], [0], [1], [0, 0, 1, 1], [], []>} : vector<8x128xf32>, vector<128x128xf32>, vector<8x128xf32> -> vector<8x128xf32>
    %c0_9 = arith.constant 0 : index
    %c0_10 = arith.constant 0 : index
    %10 = vector.load %arg6[%c0_9, %c0_10] : memref<1x128xf32, #tpu.memory_space<vmem>>, vector<1x128xf32>
    %11 = vector.broadcast %10 : vector<1x128xf32> to vector<8x128xf32>
    %12 = arith.addf %9, %11 : vector<8x128xf32>
    %cst_11 = arith.constant 0.000000e+00 : f32
    %13 = vector.broadcast %cst_11 : f32 to vector<8x128xf32>
    %14 = arith.maximumf %12, %13 : vector<8x128xf32>
    %c0_12 = arith.constant 0 : index
    %c0_13 = arith.constant 0 : index
    %15 = vector.load %arg4[%c0_12, %c0_13] : memref<128x128xf32, #tpu.memory_space<vmem>>, vector<128x128xf32>
    %cst_14 = arith.constant dense<0.000000e+00> : vector<8x128xf32>
    %16 = tpu.matmul %14, %15, %cst_14 {dimension_numbers = #tpu.dot_dimension_numbers<[1], [0], [0], [1], [0, 0, 1, 1], [], []>} : vector<8x128xf32>, vector<128x128xf32>, vector<8x128xf32> -> vector<8x128xf32>
    %c0_15 = arith.constant 0 : index
    %c0_16 = arith.constant 0 : index
    %17 = vector.load %arg7[%c0_15, %c0_16] : memref<1x128xf32, #tpu.memory_space<vmem>>, vector<1x128xf32>
    %18 = vector.broadcast %17 : vector<1x128xf32> to vector<8x128xf32>
    %19 = arith.addf %16, %18 : vector<8x128xf32>
    %c0_17 = arith.constant 0 : index
    %c0_18 = arith.constant 0 : index
    %20 = vector.load %arg8[%c0_17, %c0_18] : memref<8x128xf32, #tpu.memory_space<vmem>>, vector<8x128xf32>
    tpu.vector_store %arg8[%c0_17, %c0_18], %19 {strides = array<i32>} : memref<8x128xf32, #tpu.memory_space<vmem>>, vector<8x128xf32>,
    return
  }
  func.func @transform_0(%arg0: i32) -> (i32, i32) {
    %c0_i32 = arith.constant 0 : i32
    %c0_i32_0 = arith.constant 0 : i32
    return %arg0, %c0_i32 : i32, i32
  }
  func.func @transform_1(%arg0: i32) -> (i32, i32) {
    %c0_i32 = arith.constant 0 : i32
    %c0_i32_0 = arith.constant 0 : i32
    %c0_i32_1 = arith.constant 0 : i32
    return %c0_i32, %c0_i32_0 : i32, i32
  }
  func.func @transform_2(%arg0: i32) -> (i32, i32) {
    %c0_i32 = arith.constant 0 : i32
    %c0_i32_0 = arith.constant 0 : i32
    %c0_i32_1 = arith.constant 0 : i32
    return %c0_i32, %c0_i32_0 : i32, i32
  }
  func.func @transform_3(%arg0: i32) -> (i32, i32) {
    %c0_i32 = arith.constant 0 : i32
    %c0_i32_0 = arith.constant 0 : i32
    %c0_i32_1 = arith.constant 0 : i32
    return %c0_i32, %c0_i32_0 : i32, i32
  }
  func.func @transform_4(%arg0: i32) -> (i32, i32) {
    %c0_i32 = arith.constant 0 : i32
    %c0_i32_0 = arith.constant 0 : i32
    %c0_i32_1 = arith.constant 0 : i32
    return %c0_i32, %c0_i32_0 : i32, i32
  }
  func.func @transform_5(%arg0: i32) -> (i32, i32) {
    %c0_i32 = arith.constant 0 : i32
    %c0_i32_0 = arith.constant 0 : i32
    %c0_i32_1 = arith.constant 0 : i32
    return %c0_i32, %c0_i32_0 : i32, i32
  }
  func.func @transform_6(%arg0: i32) -> (i32, i32) {
    %c0_i32 = arith.constant 0 : i32
    %c0_i32_0 = arith.constant 0 : i32
    %c0_i32_1 = arith.constant 0 : i32
    return %c0_i32, %c0_i32_0 : i32, i32
  }
  func.func @transform_7(%arg0: i32) -> (i32, i32) {
    %c0_i32 = arith.constant 0 : i32
    %c0_i32_0 = arith.constant 0 : i32
    return %arg0, %c0_i32 : i32, i32
  }
}

module attributes {stable_mosaic.version = 11 : i64} {
  func.func @_mlp_kernel(%arg0: i32, %arg1: memref<8x128xf32, #tpu.memory_space<vmem>>, %arg2: memref<128x128xf32, #tpu.memory_space<vmem>>, %arg3: memref<128x128xf32, #tpu.memory_space<vmem>>, %arg4: memref<128x128xf32, #tpu.memory_space<vmem>>, %arg5: memref<1x128xf32, #tpu.memory_space<vmem>>, %arg6: memref<1x128xf32, #tpu.memory_space<vmem>>, %arg7: memref<1x128xf32, #tpu.memory_space<vmem>>, %arg8: memref<8x128xf32, #tpu.memory_space<vmem>>) attributes {dimension_semantics = [#tpu.dimension_semantics<parallel>], iteration_bounds = array<i64: 1>, scalar_prefetch = 0 : i64, scratch_operands = 0 : i64, tpu.core_type = #tpu.core_type<tc>, window_params = [{transform_indices = @transform_0, window_bounds = array<i64: 8, 128>}, {pipeline_mode = #tpu.pipeline_mode<synchronous>, transform_indices = @transform_1, window_bounds = array<i64: 128, 128>}, {pipeline_mode = #tpu.pipeline_mode<synchronous>, transform_indices = @transform_2, window_bounds = array<i64: 128, 128>}, {pipeline_mode = #tpu.pipeline_mode<synchronous>, transform_indices = @transform_3, window_bounds = array<i64: 128, 128>}, {pipeline_mode = #tpu.pipeline_mode<synchronous>, transform_indices = @transform_4, window_bounds = array<i64: 1, 128>}, {pipeline_mode = #tpu.pipeline_mode<synchronous>, transform_indices = @transform_5, window_bounds = array<i64: 1, 128>}, {pipeline_mode = #tpu.pipeline_mode<synchronous>, transform_indices = @transform_6, window_bounds = array<i64: 1, 128>}, {transform_indices = @transform_7, window_bounds = array<i64: 8, 128>}]} {
    %c0 = arith.constant 0 : index
    %c0_0 = arith.constant 0 : index
    %0 = vector.load %arg1[%c0, %c0_0] : memref<8x128xf32, #tpu.memory_space<vmem>>, vector<8x128xf32>
    %c0_1 = arith.constant 0 : index
    %c0_2 = arith.constant 0 : index
    %1 = vector.load %arg2[%c0_1, %c0_2] : memref<128x128xf32, #tpu.memory_space<vmem>>, vector<128x128xf32>
    %cst = arith.constant dense<0.000000e+00> : vector<8x128xf32>
    %2 = tpu.matmul %0, %1, %cst {dimension_numbers = #tpu.dot_dimension_numbers<[1], [0], [0], [1], [0, 0, 1, 1], [], []>} : vector<8x128xf32>, vector<128x128xf32>, vector<8x128xf32> -> vector<8x128xf32>
    %c0_3 = arith.constant 0 : index
    %c0_4 = arith.constant 0 : index
    %3 = vector.load %arg5[%c0_3, %c0_4] : memref<1x128xf32, #tpu.memory_space<vmem>>, vector<1x128xf32>
    %4 = vector.broadcast %3 : vector<1x128xf32> to vector<8x128xf32>
    %5 = arith.addf %2, %4 : vector<8x128xf32>
    %cst_5 = arith.constant 0.000000e+00 : f32
    %6 = vector.broadcast %cst_5 : f32 to vector<8x128xf32>
    %7 = arith.maximumf %5, %6 : vector<8x128xf32>
    %c0_6 = arith.constant 0 : index
    %c0_7 = arith.constant 0 : index
    %8 = vector.load %arg3[%c0_6, %c0_7] : memref<128x128xf32, #tpu.memory_space<vmem>>, vector<128x128xf32>
    %cst_8 = arith.constant dense<0.000000e+00> : vector<8x128xf32>
    %9 = tpu.matmul %7, %8, %cst_8 {dimension_numbers = #tpu.dot_dimension_numbers<[1], [0], [0], [1], [0, 0, 1, 1], [], []>} : vector<8x128xf32>, vector<128x128xf32>, vector<8x128xf32> -> vector<8x128xf32>
    %c0_9 = arith.constant 0 : index
    %c0_10 = arith.constant 0 : index
    %10 = vector.load %arg6[%c0_9, %c0_10] : memref<1x128xf32, #tpu.memory_space<vmem>>, vector<1x128xf32>
    %11 = vector.broadcast %10 : vector<1x128xf32> to vector<8x128xf32>
    %12 = arith.addf %9, %11 : vector<8x128xf32>
    %cst_11 = arith.constant 0.000000e+00 : f32
    %13 = vector.broadcast %cst_11 : f32 to vector<8x128xf32>
    %14 = arith.maximumf %12, %13 : vector<8x128xf32>
    %c0_12 = arith.constant 0 : index
    %c0_13 = arith.constant 0 : index
    %15 = vector.load %arg4[%c0_12, %c0_13] : memref<128x128xf32, #tpu.memory_space<vmem>>, vector<128x128xf32>
    %cst_14 = arith.constant dense<0.000000e+00> : vector<8x128xf32>
    %16 = tpu.matmul %14, %15, %cst_14 {dimension_numbers = #tpu.dot_dimension_numbers<[1], [0], [0], [1], [0, 0, 1, 1], [], []>} : vector<8x128xf32>, vector<128x128xf32>, vector<8x128xf32> -> vector<8x128xf32>
    %c0_15 = arith.constant 0 : index
    %c0_16 = arith.constant 0 : index
    %17 = vector.load %arg7[%c0_15, %c0_16] : memref<1x128xf32, #tpu.memory_space<vmem>>, vector<1x128xf32>
    %18 = vector.broadcast %17 : vector<1x128xf32> to vector<8x128xf32>
    %19 = arith.addf %16, %18 : vector<8x128xf32>
    %c0_17 = arith.constant 0 : index
    %c0_18 = arith.constant 0 : index
    %20 = vector.load %arg8[%c0_17, %c0_18] : memref<8x128xf32, #tpu.memory_space<vmem>>, vector<8x128xf32>
    tpu.vector_store %arg8[%c0_17, %c0_18], %19 {strides = array<i32>} : memref<8x128xf32, #tpu.memory_space<vmem>>, vector<8x128xf32>,
    return
  }
  func.func @transform_0(%arg0: i32) -> (i32, i32) {
    %c0_i32 = arith.constant 0 : i32
    %c0_i32_0 = arith.constant 0 : i32
    return %arg0, %c0_i32 : i32, i32
  }
  func.func @transform_1(%arg0: i32) -> (i32, i32) {
    %c0_i32 = arith.constant 0 : i32
    %c0_i32_0 = arith.constant 0 : i32
    %c0_i32_1 = arith.constant 0 : i32
    return %c0_i32, %c0_i32_0 : i32, i32
  }
  func.func @transform_2(%arg0: i32) -> (i32, i32) {
    %c0_i32 = arith.constant 0 : i32
    %c0_i32_0 = arith.constant 0 : i32
    %c0_i32_1 = arith.constant 0 : i32
    return %c0_i32, %c0_i32_0 : i32, i32
  }
  func.func @transform_3(%arg0: i32) -> (i32, i32) {
    %c0_i32 = arith.constant 0 : i32
    %c0_i32_0 = arith.constant 0 : i32
    %c0_i32_1 = arith.constant 0 : i32
    return %c0_i32, %c0_i32_0 : i32, i32
  }
  func.func @transform_4(%arg0: i32) -> (i32, i32) {
    %c0_i32 = arith.constant 0 : i32
    %c0_i32_0 = arith.constant 0 : i32
    %c0_i32_1 = arith.constant 0 : i32
    return %c0_i32, %c0_i32_0 : i32, i32
  }
  func.func @transform_5(%arg0: i32) -> (i32, i32) {
    %c0_i32 = arith.constant 0 : i32
    %c0_i32_0 = arith.constant 0 : i32
    %c0_i32_1 = arith.constant 0 : i32
    return %c0_i32, %c0_i32_0 : i32, i32
  }
  func.func @transform_6(%arg0: i32) -> (i32, i32) {
    %c0_i32 = arith.constant 0 : i32
    %c0_i32_0 = arith.constant 0 : i32
    %c0_i32_1 = arith.constant 0 : i32
    return %c0_i32, %c0_i32_0 : i32, i32
  }
  func.func @transform_7(%arg0: i32) -> (i32, i32) {
    %c0_i32 = arith.constant 0 : i32
    %c0_i32_0 = arith.constant 0 : i32
    return %arg0, %c0_i32 : i32, i32
  }
}

</mosaic_0001>

<llo_original>
// kernel: tpu_custom_call.1
$region0: #{tpu_custom_call.1}
  #allocation0 [shape = 'u32[]', space=smem, size = 0x4, offset = 0x4, fixed_abs, tag = 'smem constant byte address 0x4 - core index']
  #allocation1 [shape = 'u32[72,128]{1,0:T(1,128)}', space=vmem, size = 0x9000, scoped, tag = 'internal scratch']
  %s0 = inlined_call_operand.hbm [shape: f32[8,128], index: 0, kind: input, shape index: {}]
  %s1 = inlined_call_operand.hbm [shape: f32[128,128], index: 1, kind: input, shape index: {}]
  %s2 = inlined_call_operand.hbm [shape: f32[128,128], index: 2, kind: input, shape index: {}]
  %s3 = inlined_call_operand.hbm [shape: f32[128,128], index: 3, kind: input, shape index: {}]
  %s4 = inlined_call_operand.vmem [shape: f32[1,128], index: 4, kind: input, shape index: {}]
  %s5 = inlined_call_operand.vmem [shape: f32[1,128], index: 5, kind: input, shape index: {}]
  %s6 = inlined_call_operand.vmem [shape: f32[1,128], index: 6, kind: input, shape index: {}]
  %s7 = inlined_call_operand.hbm [shape: f32[8,128], index: 7, kind: output, shape index: {}]
  %s8 = sld [smem:[#allocation0]]
  $region54: #{tpu_custom_call.1} parent=0
    _
  %s10 = ssub.s32 1, %s8
  %s11 = scalar_select 0, %s10, %s8
  $region1: #{tpu_custom_call.1} parent=0
    #allocation2 [shape = 'u8[4096]{0}', space=vmem, size = 0x1000, scoped, tag = 'input window, operand 0, single buffered']
    #allocation3 [shape = 's32[1]{0}', space=sflag, size = 0x4, scoped, tag = 'scoped memory for tpu_custom_call.1']
    #allocation4 [shape = 's32[1]{0}', space=sflag, size = 0x4, scoped, tag = 'scoped memory for tpu_custom_call.1']
    #allocation5 [shape = 'u8[65536]{0}', space=vmem, size = 0x10000, scoped, tag = 'input window, operand 1, single buffered']
    #allocation6 [shape = 's32[1]{0}', space=sflag, size = 0x4, scoped, tag = 'scoped memory for tpu_custom_call.1']
    #allocation7 [shape = 'u8[65536]{0}', space=vmem, size = 0x10000, scoped, tag = 'input window, operand 2, single buffered']
    #allocation8 [shape = 'u8[65536]{0}', space=vmem, size = 0x10000, scoped, tag = 'input window, operand 3, single buffered']
    #allocation9 [shape = 's32[1]{0}', space=sflag, size = 0x4, scoped, tag = 'scoped memory for tpu_custom_call.1']
    #allocation10 [shape = 'u8[4096]{0}', space=vmem, size = 0x1000, scoped, tag = 'output window, operand 0, single buffered']
    %12 = vsyncpa [#allocation3], 0
    %13 = vsyncpa [#allocation6], 0
    %14 = vsyncpa [#allocation9], 0
    %15 = vsyncpa [#allocation4], 0
    // Predicated region
    $region2: #{tpu_custom_call.1} parent=1 // pred_check
      _
    $region3: #{tpu_custom_call.1} parent=1 // pred_check_branch
      %17 = sbr.rel (0) target = $region5
    $region4: #{tpu_custom_call.1} parent=1 // pred_region
      %19 = vsyncadd [#allocation3], 0
      %s21 = sshll.u32 %s0, 4
      %s22 = int_to_ptr.hbm [resolvable:$true] %s21
      %s23 = sshll.u32 [#allocation2], 4
      %s24 = int_to_ptr.vmem [resolvable:$true] %s23
      %26 = dma.hbm_to_vmem [thread:$0]  %s22, 128, %s24, [#allocation3]
    $region5: #{tpu_custom_call.1} parent=1 // pred_fallthru
      _
    // Predicated region
    $region6: #{tpu_custom_call.1} parent=1 // pred_check
      _
    $region7: #{tpu_custom_call.1} parent=1 // pred_check_branch
      %28 = sbr.rel (0) target = $region9
    $region8: #{tpu_custom_call.1} parent=1 // pred_region
      %30 = vsyncadd [#allocation6], 0
      %s31 = sshll.u32 %s1, 4
      %s32 = int_to_ptr.hbm [resolvable:$true] %s31
      %s33 = sshll.u32 [#allocation5], 4
      %s34 = int_to_ptr.vmem [resolvable:$true] %s33
      %39 = dma.hbm_to_vmem [thread:$0]  %s32, 2048, %s34, [#allocation6], 128, 128, 8
    $region9: #{tpu_custom_call.1} parent=1 // pred_fallthru
      _
    // Predicated region
    $region10: #{tpu_custom_call.1} parent=1 // pred_check
      _
    $region11: #{tpu_custom_call.1} parent=1 // pred_check_branch
      %41 = sbr.rel (0) target = $region13
    $region12: #{tpu_custom_call.1} parent=1 // pred_region
      %43 = vsyncadd [#allocation6], 0
      %s44 = sshll.u32 %s2, 4
      %s45 = int_to_ptr.hbm [resolvable:$true] %s44
      %s46 = sshll.u32 [#allocation7], 4
      %s47 = int_to_ptr.vmem [resolvable:$true] %s46
      %52 = dma.hbm_to_vmem [thread:$0]  %s45, 2048, %s47, [#allocation6], 128, 128, 8
    $region13: #{tpu_custom_call.1} parent=1 // pred_fallthru
      _
    // Predicated region
    $region14: #{tpu_custom_call.1} parent=1 // pred_check
      _
    $region15: #{tpu_custom_call.1} parent=1 // pred_check_branch
      %54 = sbr.rel (0) target = $region17
    $region16: #{tpu_custom_call.1} parent=1 // pred_region
      %56 = vsyncadd [#allocation9], 0
      %s57 = sshll.u32 %s3, 4
      %s58 = int_to_ptr.hbm [resolvable:$true] %s57
      %s59 = sshll.u32 [#allocation8], 4
      %s60 = int_to_ptr.vmem [resolvable:$true] %s59
      %65 = dma.hbm_to_vmem [thread:$0]  %s58, 2048, %s60, [#allocation9], 128, 128, 8
    $region17: #{tpu_custom_call.1} parent=1 // pred_fallthru
      _
    // Predicated region
    $region18: #{tpu_custom_call.1} parent=1 // pred_check
      _
    $region19: #{tpu_custom_call.1} parent=1 // pred_check_branch
      %67 = sbr.rel (0) target = $region21
    $region20: #{tpu_custom_call.1} parent=1 // pred_region
      _
    $region21: #{tpu_custom_call.1} parent=1 // pred_fallthru
      _
    // Predicated region
    $region22: #{tpu_custom_call.1} parent=1 // pred_check
      _
    $region23: #{tpu_custom_call.1} parent=1 // pred_check_branch
      %69 = sbr.rel (0) target = $region25
    $region24: #{tpu_custom_call.1} parent=1 // pred_region
      _
    $region25: #{tpu_custom_call.1} parent=1 // pred_fallthru
      _
    // Predicated region
    $region26: #{tpu_custom_call.1} parent=1 // pred_check
      _
    $region27: #{tpu_custom_call.1} parent=1 // pred_check_branch
      %71 = sbr.rel (0) target = $region29
    $region28: #{tpu_custom_call.1} parent=1 // pred_region
      _
    $region29: #{tpu_custom_call.1} parent=1 // pred_fallthru
      _
    // Predicated region
    $region30: #{tpu_custom_call.1} parent=1 // pred_check
      _
    $region31: #{tpu_custom_call.1} parent=1 // pred_check_branch
      %73 = sbr.rel (0) target = $region33
    $region32: #{tpu_custom_call.1} parent=1 // pred_region
      %75 = dma.done [#allocation3], 128
    $region33: #{tpu_custom_call.1} parent=1 // pred_fallthru
      _
    // Predicated region
    $region34: #{tpu_custom_call.1} parent=1 // pred_check
      _
    $region35: #{tpu_custom_call.1} parent=1 // pred_check_branch
      %77 = sbr.rel (0) target = $region37
    $region36: #{tpu_custom_call.1} parent=1 // pred_region
      %79 = dma.done [#allocation6], 2048
    $region37: #{tpu_custom_call.1} parent=1 // pred_fallthru
      _
    // Predicated region
    $region38: #{tpu_custom_call.1} parent=1 // pred_check
      _
    $region39: #{tpu_custom_call.1} parent=1 // pred_check_branch
      %81 = sbr.rel (0) target = $region41
    $region40: #{tpu_custom_call.1} parent=1 // pred_region
      %83 = dma.done [#allocation6], 2048
    $region41: #{tpu_custom_call.1} parent=1 // pred_fallthru
      _
    // Predicated region
    $region42: #{tpu_custom_call.1} parent=1 // pred_check
      _
    $region43: #{tpu_custom_call.1} parent=1 // pred_check_branch
      %85 = sbr.rel (0) target = $region45
    $region44: #{tpu_custom_call.1} parent=1 // pred_region
      %87 = dma.done [#allocation9], 2048
    $region45: #{tpu_custom_call.1} parent=1 // pred_fallthru
      _
    %v88 = vld [vmem:[#allocation2] sm:$0xff]
    %v89 = vld [vmem:[#allocation5] sm:$0xff]
    %v90 = vld [vmem:[#allocation5 + $0x8] sm:$0xff]
    %v91 = vld [vmem:[#allocation5 + $0x10] sm:$0xff]
    %v92 = vld [vmem:[#allocation5 + $0x18] sm:$0xff]
    %v93 = vld [vmem:[#allocation5 + $0x20] sm:$0xff]
    %v94 = vld [vmem:[#allocation5 + $0x28] sm:$0xff]
    %v95 = vld [vmem:[#allocation5 + $0x30] sm:$0xff]
    %v96 = vld [vmem:[#allocation5 + $0x38] sm:$0xff]
    %v97 = vld [vmem:[#allocation5 + $0x40] sm:$0xff]
    %v98 = vld [vmem:[#allocation5 + $0x48] sm:$0xff]
    %v99 = vld [vmem:[#allocation5 + $0x50] sm:$0xff]
    %v100 = vld [vmem:[#allocation5 + $0x58] sm:$0xff]
    %v101 = vld [vmem:[#allocation5 + $0x60] sm:$0xff]
    %v102 = vld [vmem:[#allocation5 + $0x68] sm:$0xff]
    %v103 = vld [vmem:[#allocation5 + $0x70] sm:$0xff]
    %v104 = vld [vmem:[#allocation5 + $0x78] sm:$0xff]
    %v105 = vld [vmem:[%s4] sm:$0x1]
    %v107 = vperm.slane %v105, 0
    %109 = vmatpush.msra.mxu0 %v104
    %110 = vmatpush.msra.mxu0 %v103
    %111 = vmatpush.msra.mxu0 %v102
    %112 = vmatpush.msra.mxu0 %v101
    %113 = vmatpush.msra.mxu0 %v100
    %114 = vmatpush.msra.mxu0 %v99
    %115 = vmatpush.msra.mxu0 %v98
    %116 = vmatpush.msra.mxu0 %v97
    %117 = vmatpush.msra.mxu0 %v96
    %118 = vmatpush.msra.mxu0 %v95
    %119 = vmatpush.msra.mxu0 %v94
    %120 = vmatpush.msra.mxu0 %v93
    %121 = vmatpush.msra.mxu0 %v92
    %122 = vmatpush.msra.mxu0 %v91
    %123 = vmatpush.msra.mxu0 %v90
    %124 = vmatpush.msra.mxu0 %v89
    %125 = vmatmul.f32.gmra.mxu0 %v88
    %v126 = vpop.f32.mrf.mxu0
    %v127 = vadd.f32 %v107, %v126
    %128 = vdwg.mxu0
    %v129 = vmax.f32 %v127, 0.0
    %v130 = vld [vmem:[#allocation7] sm:$0xff]
    %v131 = vld [vmem:[#allocation7 + $0x8] sm:$0xff]
    %v132 = vld [vmem:[#allocation7 + $0x10] sm:$0xff]
    %v133 = vld [vmem:[#allocation7 + $0x18] sm:$0xff]
    %v134 = vld [vmem:[#allocation7 + $0x20] sm:$0xff]
    %v135 = vld [vmem:[#allocation7 + $0x28] sm:$0xff]
    %v136 = vld [vmem:[#allocation7 + $0x30] sm:$0xff]
    %v137 = vld [vmem:[#allocation7 + $0x38] sm:$0xff]
    %v138 = vld [vmem:[#allocation7 + $0x40] sm:$0xff]
    %v139 = vld [vmem:[#allocation7 + $0x48] sm:$0xff]
    %v140 = vld [vmem:[#allocation7 + $0x50] sm:$0xff]
    %v141 = vld [vmem:[#allocation7 + $0x58] sm:$0xff]
    %v142 = vld [vmem:[#allocation7 + $0x60] sm:$0xff]
    %v143 = vld [vmem:[#allocation7 + $0x68] sm:$0xff]
    %v144 = vld [vmem:[#allocation7 + $0x70] sm:$0xff]
    %v145 = vld [vmem:[#allocation7 + $0x78] sm:$0xff]
    %v146 = vld [vmem:[%s5] sm:$0x1]
    %v148 = vperm.slane %v146, 0
    %150 = vmatpush.msra.mxu0 %v145
    %151 = vmatpush.msra.mxu0 %v144
    %152 = vmatpush.msra.mxu0 %v143
    %153 = vmatpush.msra.mxu0 %v142
    %154 = vmatpush.msra.mxu0 %v141
    %155 = vmatpush.msra.mxu0 %v140
    %156 = vmatpush.msra.mxu0 %v139
    %157 = vmatpush.msra.mxu0 %v138
    %158 = vmatpush.msra.mxu0 %v137
    %159 = vmatpush.msra.mxu0 %v136
    %160 = vmatpush.msra.mxu0 %v135
    %161 = vmatpush.msra.mxu0 %v134
    %162 = vmatpush.msra.mxu0 %v133
    %163 = vmatpush.msra.mxu0 %v132
    %164 = vmatpush.msra.mxu0 %v131
    %165 = vmatpush.msra.mxu0 %v130
    %166 = vmatmul.f32.gmra.mxu0 %v129
    %v167 = vpop.f32.mrf.mxu0
    %v168 = vadd.f32 %v148, %v167
    %169 = vdwg.mxu0
    %v170 = vmax.f32 %v168, 0.0
    %v171 = vld [vmem:[#allocation8] sm:$0xff]
    %v172 = vld [vmem:[#allocation8 + $0x8] sm:$0xff]
    %v173 = vld [vmem:[#allocation8 + $0x10] sm:$0xff]
    %v174 = vld [vmem:[#allocation8 + $0x18] sm:$0xff]
    %v175 = vld [vmem:[#allocation8 + $0x20] sm:$0xff]
    %v176 = vld [vmem:[#allocation8 + $0x28] sm:$0xff]
    %v177 = vld [vmem:[#allocation8 + $0x30] sm:$0xff]
    %v178 = vld [vmem:[#allocation8 + $0x38] sm:$0xff]
    %v179 = vld [vmem:[#allocation8 + $0x40] sm:$0xff]
    %v180 = vld [vmem:[#allocation8 + $0x48] sm:$0xff]
    %v181 = vld [vmem:[#allocation8 + $0x50] sm:$0xff]
    %v182 = vld [vmem:[#allocation8 + $0x58] sm:$0xff]
    %v183 = vld [vmem:[#allocation8 + $0x60] sm:$0xff]
    %v184 = vld [vmem:[#allocation8 + $0x68] sm:$0xff]
    %v185 = vld [vmem:[#allocation8 + $0x70] sm:$0xff]
    %v186 = vld [vmem:[#allocation8 + $0x78] sm:$0xff]
    %v187 = vld [vmem:[%s6] sm:$0x1]
    %v189 = vperm.slane %v187, 0
    %191 = vmatpush.msra.mxu0 %v186
    %192 = vmatpush.msra.mxu0 %v185
    %193 = vmatpush.msra.mxu0 %v184
    %194 = vmatpush.msra.mxu0 %v183
    %195 = vmatpush.msra.mxu0 %v182
    %196 = vmatpush.msra.mxu0 %v181
    %197 = vmatpush.msra.mxu0 %v180
    %198 = vmatpush.msra.mxu0 %v179
    %199 = vmatpush.msra.mxu0 %v178
    %200 = vmatpush.msra.mxu0 %v177
    %201 = vmatpush.msra.mxu0 %v176
    %202 = vmatpush.msra.mxu0 %v175
    %203 = vmatpush.msra.mxu0 %v174
    %204 = vmatpush.msra.mxu0 %v173
    %205 = vmatpush.msra.mxu0 %v172
    %206 = vmatpush.msra.mxu0 %v171
    %207 = vmatmul.f32.gmra.mxu0 %v170
    %v208 = vpop.f32.mrf.mxu0
    %v209 = vadd.f32 %v189, %v208
    %210 = vdwg.mxu0
    %211 = vst [vmem:[#allocation10] sm:$0xff] %v209
    // Predicated region
    $region46: #{tpu_custom_call.1} parent=1 // pred_check
      _
    $region47: #{tpu_custom_call.1} parent=1 // pred_check_branch
      %213 = sbr.rel (0) target = $region49
    $region48: #{tpu_custom_call.1} parent=1 // pred_region
      %215 = vsyncadd [#allocation4], 0
      %s217 = sshll.u32 [#allocation10], 4
      %s218 = int_to_ptr.vmem [resolvable:$true] %s217
      %s219 = sshll.u32 %s7, 4
      %s220 = int_to_ptr.hbm [resolvable:$true] %s219
      %222 = dma.vmem_to_hbm [thread:$0]  %s218, 128, %s220, [#allocation4]
    $region49: #{tpu_custom_call.1} parent=1 // pred_fallthru
      _
    // Predicated region
    $region50: #{tpu_custom_call.1} parent=1 // pred_check
      _
    $region51: #{tpu_custom_call.1} parent=1 // pred_check_branch
      %224 = sbr.rel (0) target = $region53
    $region52: #{tpu_custom_call.1} parent=1 // pred_region
      %226 = dma.done [#allocation4], 128
    $region53: #{tpu_custom_call.1} parent=1 // pred_fallthru
      _
    %227 = vsyncpa [#allocation3], 1
    %228 = vsyncpa [#allocation6], 1
    %229 = vsyncpa [#allocation9], 1
    %230 = vsyncpa [#allocation4], 1

// kernel: tpu_custom_call.1
$region0: #{tpu_custom_call.1}
  #allocation0 [shape = 'u32[]', space=smem, size = 0x4, offset = 0x4, fixed_abs, tag = 'smem constant byte address 0x4 - core index']
  #allocation1 [shape = 'u32[72,128]{1,0:T(1,128)}', space=vmem, size = 0x9000, scoped, tag = 'internal scratch']
  %s0 = inlined_call_operand.hbm [shape: f32[8,128], index: 0, kind: input, shape index: {}]
  %s1 = inlined_call_operand.hbm [shape: f32[128,128], index: 1, kind: input, shape index: {}]
  %s2 = inlined_call_operand.hbm [shape: f32[128,128], index: 2, kind: input, shape index: {}]
  %s3 = inlined_call_operand.hbm [shape: f32[128,128], index: 3, kind: input, shape index: {}]
  %s4 = inlined_call_operand.vmem [shape: f32[1,128], index: 4, kind: input, shape index: {}]
  %s5 = inlined_call_operand.vmem [shape: f32[1,128], index: 5, kind: input, shape index: {}]
  %s6 = inlined_call_operand.vmem [shape: f32[1,128], index: 6, kind: input, shape index: {}]
  %s7 = inlined_call_operand.hbm [shape: f32[8,128], index: 7, kind: output, shape index: {}]
  %s8 = sld [smem:[#allocation0]]
  $region54: #{tpu_custom_call.1} parent=0
    _
  %s10 = ssub.s32 1, %s8
  %s11 = scalar_select 0, %s10, %s8
  $region1: #{tpu_custom_call.1} parent=0
    #allocation2 [shape = 'u8[4096]{0}', space=vmem, size = 0x1000, scoped, tag = 'input window, operand 0, single buffered']
    #allocation3 [shape = 's32[1]{0}', space=sflag, size = 0x4, scoped, tag = 'scoped memory for tpu_custom_call.1']
    #allocation4 [shape = 's32[1]{0}', space=sflag, size = 0x4, scoped, tag = 'scoped memory for tpu_custom_call.1']
    #allocation5 [shape = 'u8[65536]{0}', space=vmem, size = 0x10000, scoped, tag = 'input window, operand 1, single buffered']
    #allocation6 [shape = 's32[1]{0}', space=sflag, size = 0x4, scoped, tag = 'scoped memory for tpu_custom_call.1']
    #allocation7 [shape = 'u8[65536]{0}', space=vmem, size = 0x10000, scoped, tag = 'input window, operand 2, single buffered']
    #allocation8 [shape = 'u8[65536]{0}', space=vmem, size = 0x10000, scoped, tag = 'input window, operand 3, single buffered']
    #allocation9 [shape = 's32[1]{0}', space=sflag, size = 0x4, scoped, tag = 'scoped memory for tpu_custom_call.1']
    #allocation10 [shape = 'u8[4096]{0}', space=vmem, size = 0x1000, scoped, tag = 'output window, operand 0, single buffered']
    %12 = vsyncpa [#allocation3], 0
    %13 = vsyncpa [#allocation6], 0
    %14 = vsyncpa [#allocation9], 0
    %15 = vsyncpa [#allocation4], 0
    // Predicated region
    $region2: #{tpu_custom_call.1} parent=1 // pred_check
      _
    $region3: #{tpu_custom_call.1} parent=1 // pred_check_branch
      %17 = sbr.rel (0) target = $region5
    $region4: #{tpu_custom_call.1} parent=1 // pred_region
      %19 = vsyncadd [#allocation3], 0
      %s21 = sshll.u32 %s0, 4
      %s22 = int_to_ptr.hbm [resolvable:$true] %s21
      %s23 = sshll.u32 [#allocation2], 4
      %s24 = int_to_ptr.vmem [resolvable:$true] %s23
      %26 = dma.hbm_to_vmem [thread:$0]  %s22, 128, %s24, [#allocation3]
    $region5: #{tpu_custom_call.1} parent=1 // pred_fallthru
      _
    // Predicated region
    $region6: #{tpu_custom_call.1} parent=1 // pred_check
      _
    $region7: #{tpu_custom_call.1} parent=1 // pred_check_branch
      %28 = sbr.rel (0) target = $region9
    $region8: #{tpu_custom_call.1} parent=1 // pred_region
      %30 = vsyncadd [#allocation6], 0
      %s31 = sshll.u32 %s1, 4
      %s32 = int_to_ptr.hbm [resolvable:$true] %s31
      %s33 = sshll.u32 [#allocation5], 4
      %s34 = int_to_ptr.vmem [resolvable:$true] %s33
      %39 = dma.hbm_to_vmem [thread:$0]  %s32, 2048, %s34, [#allocation6], 128, 128, 8
    $region9: #{tpu_custom_call.1} parent=1 // pred_fallthru
      _
    // Predicated region
    $region10: #{tpu_custom_call.1} parent=1 // pred_check
      _
    $region11: #{tpu_custom_call.1} parent=1 // pred_check_branch
      %41 = sbr.rel (0) target = $region13
    $region12: #{tpu_custom_call.1} parent=1 // pred_region
      %43 = vsyncadd [#allocation6], 0
      %s44 = sshll.u32 %s2, 4
      %s45 = int_to_ptr.hbm [resolvable:$true] %s44
      %s46 = sshll.u32 [#allocation7], 4
      %s47 = int_to_ptr.vmem [resolvable:$true] %s46
      %52 = dma.hbm_to_vmem [thread:$0]  %s45, 2048, %s47, [#allocation6], 128, 128, 8
    $region13: #{tpu_custom_call.1} parent=1 // pred_fallthru
      _
    // Predicated region
    $region14: #{tpu_custom_call.1} parent=1 // pred_check
      _
    $region15: #{tpu_custom_call.1} parent=1 // pred_check_branch
      %54 = sbr.rel (0) target = $region17
    $region16: #{tpu_custom_call.1} parent=1 // pred_region
      %56 = vsyncadd [#allocation9], 0
      %s57 = sshll.u32 %s3, 4
      %s58 = int_to_ptr.hbm [resolvable:$true] %s57
      %s59 = sshll.u32 [#allocation8], 4
      %s60 = int_to_ptr.vmem [resolvable:$true] %s59
      %65 = dma.hbm_to_vmem [thread:$0]  %s58, 2048, %s60, [#allocation9], 128, 128, 8
    $region17: #{tpu_custom_call.1} parent=1 // pred_fallthru
      _
    // Predicated region
    $region18: #{tpu_custom_call.1} parent=1 // pred_check
      _
    $region19: #{tpu_custom_call.1} parent=1 // pred_check_branch
      %67 = sbr.rel (0) target = $region21
    $region20: #{tpu_custom_call.1} parent=1 // pred_region
      _
    $region21: #{tpu_custom_call.1} parent=1 // pred_fallthru
      _
    // Predicated region
    $region22: #{tpu_custom_call.1} parent=1 // pred_check
      _
    $region23: #{tpu_custom_call.1} parent=1 // pred_check_branch
      %69 = sbr.rel (0) target = $region25
    $region24: #{tpu_custom_call.1} parent=1 // pred_region
      _
    $region25: #{tpu_custom_call.1} parent=1 // pred_fallthru
      _
    // Predicated region
    $region26: #{tpu_custom_call.1} parent=1 // pred_check
      _
    $region27: #{tpu_custom_call.1} parent=1 // pred_check_branch
      %71 = sbr.rel (0) target = $region29
    $region28: #{tpu_custom_call.1} parent=1 // pred_region
      _
    $region29: #{tpu_custom_call.1} parent=1 // pred_fallthru
      _
    // Predicated region
    $region30: #{tpu_custom_call.1} parent=1 // pred_check
      _
    $region31: #{tpu_custom_call.1} parent=1 // pred_check_branch
      %73 = sbr.rel (0) target = $region33
    $region32: #{tpu_custom_call.1} parent=1 // pred_region
      %75 = dma.done [#allocation3], 128
    $region33: #{tpu_custom_call.1} parent=1 // pred_fallthru
      _
    // Predicated region
    $region34: #{tpu_custom_call.1} parent=1 // pred_check
      _
    $region35: #{tpu_custom_call.1} parent=1 // pred_check_branch
      %77 = sbr.rel (0) target = $region37
    $region36: #{tpu_custom_call.1} parent=1 // pred_region
      %79 = dma.done [#allocation6], 2048
    $region37: #{tpu_custom_call.1} parent=1 // pred_fallthru
      _
    // Predicated region
    $region38: #{tpu_custom_call.1} parent=1 // pred_check
      _
    $region39: #{tpu_custom_call.1} parent=1 // pred_check_branch
      %81 = sbr.rel (0) target = $region41
    $region40: #{tpu_custom_call.1} parent=1 // pred_region
      %83 = dma.done [#allocation6], 2048
    $region41: #{tpu_custom_call.1} parent=1 // pred_fallthru
      _
    // Predicated region
    $region42: #{tpu_custom_call.1} parent=1 // pred_check
      _
    $region43: #{tpu_custom_call.1} parent=1 // pred_check_branch
      %85 = sbr.rel (0) target = $region45
    $region44: #{tpu_custom_call.1} parent=1 // pred_region
      %87 = dma.done [#allocation9], 2048
    $region45: #{tpu_custom_call.1} parent=1 // pred_fallthru
      _
    %v88 = vld [vmem:[#allocation2] sm:$0xff]
    %v89 = vld [vmem:[#allocation5] sm:$0xff]
    %v90 = vld [vmem:[#allocation5 + $0x8] sm:$0xff]
    %v91 = vld [vmem:[#allocation5 + $0x10] sm:$0xff]
    %v92 = vld [vmem:[#allocation5 + $0x18] sm:$0xff]
    %v93 = vld [vmem:[#allocation5 + $0x20] sm:$0xff]
    %v94 = vld [vmem:[#allocation5 + $0x28] sm:$0xff]
    %v95 = vld [vmem:[#allocation5 + $0x30] sm:$0xff]
    %v96 = vld [vmem:[#allocation5 + $0x38] sm:$0xff]
    %v97 = vld [vmem:[#allocation5 + $0x40] sm:$0xff]
    %v98 = vld [vmem:[#allocation5 + $0x48] sm:$0xff]
    %v99 = vld [vmem:[#allocation5 + $0x50] sm:$0xff]
    %v100 = vld [vmem:[#allocation5 + $0x58] sm:$0xff]
    %v101 = vld [vmem:[#allocation5 + $0x60] sm:$0xff]
    %v102 = vld [vmem:[#allocation5 + $0x68] sm:$0xff]
    %v103 = vld [vmem:[#allocation5 + $0x70] sm:$0xff]
    %v104 = vld [vmem:[#allocation5 + $0x78] sm:$0xff]
    %v105 = vld [vmem:[%s4] sm:$0x1]
    %v107 = vperm.slane %v105, 0
    %109 = vmatpush.msra.mxu0 %v104
    %110 = vmatpush.msra.mxu0 %v103
    %111 = vmatpush.msra.mxu0 %v102
    %112 = vmatpush.msra.mxu0 %v101
    %113 = vmatpush.msra.mxu0 %v100
    %114 = vmatpush.msra.mxu0 %v99
    %115 = vmatpush.msra.mxu0 %v98
    %116 = vmatpush.msra.mxu0 %v97
    %117 = vmatpush.msra.mxu0 %v96
    %118 = vmatpush.msra.mxu0 %v95
    %119 = vmatpush.msra.mxu0 %v94
    %120 = vmatpush.msra.mxu0 %v93
    %121 = vmatpush.msra.mxu0 %v92
    %122 = vmatpush.msra.mxu0 %v91
    %123 = vmatpush.msra.mxu0 %v90
    %124 = vmatpush.msra.mxu0 %v89
    %125 = vmatmul.f32.gmra.mxu0 %v88
    %v126 = vpop.f32.mrf.mxu0
    %v127 = vadd.f32 %v107, %v126
    %128 = vdwg.mxu0
    %v129 = vmax.f32 %v127, 0.0
    %v130 = vld [vmem:[#allocation7] sm:$0xff]
    %v131 = vld [vmem:[#allocation7 + $0x8] sm:$0xff]
    %v132 = vld [vmem:[#allocation7 + $0x10] sm:$0xff]
    %v133 = vld [vmem:[#allocation7 + $0x18] sm:$0xff]
    %v134 = vld [vmem:[#allocation7 + $0x20] sm:$0xff]
    %v135 = vld [vmem:[#allocation7 + $0x28] sm:$0xff]
    %v136 = vld [vmem:[#allocation7 + $0x30] sm:$0xff]
    %v137 = vld [vmem:[#allocation7 + $0x38] sm:$0xff]
    %v138 = vld [vmem:[#allocation7 + $0x40] sm:$0xff]
    %v139 = vld [vmem:[#allocation7 + $0x48] sm:$0xff]
    %v140 = vld [vmem:[#allocation7 + $0x50] sm:$0xff]
    %v141 = vld [vmem:[#allocation7 + $0x58] sm:$0xff]
    %v142 = vld [vmem:[#allocation7 + $0x60] sm:$0xff]
    %v143 = vld [vmem:[#allocation7 + $0x68] sm:$0xff]
    %v144 = vld [vmem:[#allocation7 + $0x70] sm:$0xff]
    %v145 = vld [vmem:[#allocation7 + $0x78] sm:$0xff]
    %v146 = vld [vmem:[%s5] sm:$0x1]
    %v148 = vperm.slane %v146, 0
    %150 = vmatpush.msra.mxu0 %v145
    %151 = vmatpush.msra.mxu0 %v144
    %152 = vmatpush.msra.mxu0 %v143
    %153 = vmatpush.msra.mxu0 %v142
    %154 = vmatpush.msra.mxu0 %v141
    %155 = vmatpush.msra.mxu0 %v140
    %156 = vmatpush.msra.mxu0 %v139
    %157 = vmatpush.msra.mxu0 %v138
    %158 = vmatpush.msra.mxu0 %v137
    %159 = vmatpush.msra.mxu0 %v136
    %160 = vmatpush.msra.mxu0 %v135
    %161 = vmatpush.msra.mxu0 %v134
    %162 = vmatpush.msra.mxu0 %v133
    %163 = vmatpush.msra.mxu0 %v132
    %164 = vmatpush.msra.mxu0 %v131
    %165 = vmatpush.msra.mxu0 %v130
    %166 = vmatmul.f32.gmra.mxu0 %v129
    %v167 = vpop.f32.mrf.mxu0
    %v168 = vadd.f32 %v148, %v167
    %169 = vdwg.mxu0
    %v170 = vmax.f32 %v168, 0.0
    %v171 = vld [vmem:[#allocation8] sm:$0xff]
    %v172 = vld [vmem:[#allocation8 + $0x8] sm:$0xff]
    %v173 = vld [vmem:[#allocation8 + $0x10] sm:$0xff]
    %v174 = vld [vmem:[#allocation8 + $0x18] sm:$0xff]
    %v175 = vld [vmem:[#allocation8 + $0x20] sm:$0xff]
    %v176 = vld [vmem:[#allocation8 + $0x28] sm:$0xff]
    %v177 = vld [vmem:[#allocation8 + $0x30] sm:$0xff]
    %v178 = vld [vmem:[#allocation8 + $0x38] sm:$0xff]
    %v179 = vld [vmem:[#allocation8 + $0x40] sm:$0xff]
    %v180 = vld [vmem:[#allocation8 + $0x48] sm:$0xff]
    %v181 = vld [vmem:[#allocation8 + $0x50] sm:$0xff]
    %v182 = vld [vmem:[#allocation8 + $0x58] sm:$0xff]
    %v183 = vld [vmem:[#allocation8 + $0x60] sm:$0xff]
    %v184 = vld [vmem:[#allocation8 + $0x68] sm:$0xff]
    %v185 = vld [vmem:[#allocation8 + $0x70] sm:$0xff]
    %v186 = vld [vmem:[#allocation8 + $0x78] sm:$0xff]
    %v187 = vld [vmem:[%s6] sm:$0x1]
    %v189 = vperm.slane %v187, 0
    %191 = vmatpush.msra.mxu0 %v186
    %192 = vmatpush.msra.mxu0 %v185
    %193 = vmatpush.msra.mxu0 %v184
    %194 = vmatpush.msra.mxu0 %v183
    %195 = vmatpush.msra.mxu0 %v182
    %196 = vmatpush.msra.mxu0 %v181
    %197 = vmatpush.msra.mxu0 %v180
    %198 = vmatpush.msra.mxu0 %v179
    %199 = vmatpush.msra.mxu0 %v178
    %200 = vmatpush.msra.mxu0 %v177
    %201 = vmatpush.msra.mxu0 %v176
    %202 = vmatpush.msra.mxu0 %v175
    %203 = vmatpush.msra.mxu0 %v174
    %204 = vmatpush.msra.mxu0 %v173
    %205 = vmatpush.msra.mxu0 %v172
    %206 = vmatpush.msra.mxu0 %v171
    %207 = vmatmul.f32.gmra.mxu0 %v170
    %v208 = vpop.f32.mrf.mxu0
    %v209 = vadd.f32 %v189, %v208
    %210 = vdwg.mxu0
    %211 = vst [vmem:[#allocation10] sm:$0xff] %v209
    // Predicated region
    $region46: #{tpu_custom_call.1} parent=1 // pred_check
      _
    $region47: #{tpu_custom_call.1} parent=1 // pred_check_branch
      %213 = sbr.rel (0) target = $region49
    $region48: #{tpu_custom_call.1} parent=1 // pred_region
      %215 = vsyncadd [#allocation4], 0
      %s217 = sshll.u32 [#allocation10], 4
      %s218 = int_to_ptr.vmem [resolvable:$true] %s217
      %s219 = sshll.u32 %s7, 4
      %s220 = int_to_ptr.hbm [resolvable:$true] %s219
      %222 = dma.vmem_to_hbm [thread:$0]  %s218, 128, %s220, [#allocation4]
    $region49: #{tpu_custom_call.1} parent=1 // pred_fallthru
      _
    // Predicated region
    $region50: #{tpu_custom_call.1} parent=1 // pred_check
      _
    $region51: #{tpu_custom_call.1} parent=1 // pred_check_branch
      %224 = sbr.rel (0) target = $region53
    $region52: #{tpu_custom_call.1} parent=1 // pred_region
      %226 = dma.done [#allocation4], 128
    $region53: #{tpu_custom_call.1} parent=1 // pred_fallthru
      _
    %227 = vsyncpa [#allocation3], 1
    %228 = vsyncpa [#allocation6], 1
    %229 = vsyncpa [#allocation9], 1
    %230 = vsyncpa [#allocation4], 1

</llo_original>
